<compile_context>
chip_gen: v7x
topology: tpu7x:2x2x1
jax: 0.10.0
libtpu: 0.0.40
codegen_flags: <defaults>
</compile_context>

<pallas_src>
import jax
import jax.numpy as jnp
from jax.experimental import pallas as pl
from jax.experimental.pallas import tpu as pltpu


# Packed parameter layout (f32[17], SMEM):
#   [0:4]   -> w1[0, :]   (fc1 weights for input feature 0)
#   [4:8]   -> w1[1, :]   (fc1 weights for input feature 1)
#   [8:12]  -> b1[:]
#   [12:16] -> w2[:, 0]
#   [16]    -> b2
def simple_nn_kernel(params_ref, x_ref, o_ref):
    # params_ref: SMEM f32[17]; x_ref: VMEM (2, SB, 128); o_ref: VMEM (SB, 128)
    x0 = x_ref[0]                                      # (SB, 128) input feature 0
    x1 = x_ref[1]                                      # (SB, 128) input feature 1

    acc = jnp.zeros_like(x0) + params_ref[16]          # start from b2
    for j in range(4):                                 # hidden width = 4, unrolled
        h = x0 * params_ref[j] + x1 * params_ref[4 + j] + params_ref[8 + j]
        h = jnp.maximum(h, 0.0)                        # torch.relu
        acc = acc + h * params_ref[12 + j]             # fc2 contraction (K=4)

    o_ref[...] = acc.astype(o_ref.dtype)


def simple_nn_forward(x, w1, b1, w2, b2, *, max_block_sublanes=2048):
    """x: (B, 2) f32.  w1: (2, 4), b1: (4,), w2: (4, 1), b2: (1,).  Returns (B, 1)."""
    B = x.shape[0]
    L = 128                                            # lane width

    # Batch -> (S sublane-rows) x (128 lanes).  Block covers sb rows per step.
    S = pl.cdiv(B, L)
    if S <= max_block_sublanes:
        sb, S_pad = S, S                               # single block (full dim OK)
    else:
        sb = max_block_sublanes                        # multiple of 8
        S_pad = pl.cdiv(S, sb) * sb
    b_pad = S_pad * L

    # Transpose so batch is on the dense (sublane, lane) axes; zero-pad batch.
    x_t = jnp.pad(x.astype(jnp.float32), ((0, b_pad - B), (0, 0))).T   # (2, b_pad)
    x_packed = x_t.reshape(2, S_pad, L)                                # (2, S_pad, 128)

    # Single packed parameter vector -> SMEM via scalar prefetch (one transfer).
    params = jnp.concatenate(
        [w1.reshape(-1), b1.reshape(-1), w2.reshape(-1), b2.reshape(-1)]
    ).astype(jnp.float32)                                              # (17,)

    y = pl.pallas_call(
        simple_nn_kernel,
        out_shape=jax.ShapeDtypeStruct((S_pad, L), jnp.float32),
        grid_spec=pltpu.PrefetchScalarGridSpec(
            num_scalar_prefetch=1,                     # params -> SMEM
            grid=(S_pad // sb,),
            in_specs=[
                pl.BlockSpec((2, sb, L), lambda i, params: (0, i, 0)),  # x slab
            ],
            out_specs=pl.BlockSpec((sb, L), lambda i, params: (i, 0)),
        ),
        compiler_params=pltpu.CompilerParams(
            dimension_semantics=("parallel",),
        ),
    )(params, x_packed)

    # Back to the PyTorch-facing (B, 1) shape, dropping batch padding.
    return y.reshape(b_pad)[:B].reshape(B, 1)


def init_params(key):
    """Deterministic init mimicking nn.Linear's U(-1/sqrt(fan_in), 1/sqrt(fan_in))."""
    k1, k2, k3, k4 = jax.random.split(key, 4)
    bound1 = 1.0 / jnp.sqrt(2.0)   # fc1 fan_in = 2
    bound2 = 1.0 / jnp.sqrt(4.0)   # fc2 fan_in = 4
    # Stored already transposed to [in, out] so the reference is x @ W + b.
    w1 = jax.random.uniform(k1, (2, 4), jnp.float32, -bound1, bound1)
    b1 = jax.random.uniform(k2, (4,), jnp.float32, -bound1, bound1)
    w2 = jax.random.uniform(k3, (4, 1), jnp.float32, -bound2, bound2)
    b2 = jax.random.uniform(k4, (1,), jnp.float32, -bound2, bound2)
    return w1, b1, w2, b2


if __name__ == "__main__":
    key = jax.random.PRNGKey(0)
    key_x, key_p = jax.random.split(key)

    batch = 8
    x = jax.random.normal(key_x, (batch, 2), jnp.float32)
    w1, b1, w2, b2 = init_params(key_p)

    out = simple_nn_forward(x, w1, b1, w2, b2)
    out = jax.block_until_ready(out)

    # Pure-JAX reference check of the same math.
    ref = jnp.maximum(x @ w1 + b1, 0.0) @ w2 + b2
    assert out.shape == (batch, 1)
    assert jnp.allclose(out, ref, atol=1e-5, rtol=1e-5)

    print("KERNEL_OK")
</pallas_src>

<mosaic_0001>
module attributes {stable_mosaic.version = 11 : i64} {
  func.func @simple_nn_kernel(%arg0: i32, %arg1: memref<17xf32, #tpu.memory_space<smem>>, %arg2: memref<2x1x128xf32, #tpu.memory_space<vmem>>, %arg3: memref<1x128xf32, #tpu.memory_space<vmem>>) attributes {dimension_semantics = [#tpu.dimension_semantics<parallel>], iteration_bounds = array<i64: 1>, scalar_prefetch = 1 : i64, scratch_operands = 0 : i64, tpu.core_type = #tpu.core_type<tc>, window_params = [{transform_indices = @transform_0, window_bounds = array<i64: 2, 1, 128>}, {transform_indices = @transform_1, window_bounds = array<i64: 1, 128>}]} {
    %c0 = arith.constant 0 : index
    %c0_0 = arith.constant 0 : index
    %c0_1 = arith.constant 0 : index
    %0 = vector.load %arg2[%c0, %c0_0, %c0_1] : memref<2x1x128xf32, #tpu.memory_space<vmem>>, vector<1x1x128xf32>
    %1 = vector.shape_cast %0 : vector<1x1x128xf32> to vector<1x128xf32>
    %c1 = arith.constant 1 : index
    %c0_2 = arith.constant 0 : index
    %c0_3 = arith.constant 0 : index
    %2 = vector.load %arg2[%c1, %c0_2, %c0_3] : memref<2x1x128xf32, #tpu.memory_space<vmem>>, vector<1x1x128xf32>
    %3 = vector.shape_cast %2 : vector<1x1x128xf32> to vector<1x128xf32>
    %cst = arith.constant 0.000000e+00 : f32
    %4 = vector.broadcast %cst : f32 to vector<1x128xf32>
    %c16 = arith.constant 16 : index
    %5 = memref.load %arg1[%c16] : memref<17xf32, #tpu.memory_space<smem>>
    %6 = vector.broadcast %5 : f32 to vector<1x128xf32>
    %7 = arith.addf %4, %6 : vector<1x128xf32>
    %c0_4 = arith.constant 0 : index
    %8 = memref.load %arg1[%c0_4] : memref<17xf32, #tpu.memory_space<smem>>
    %9 = vector.broadcast %8 : f32 to vector<1x128xf32>
    %10 = arith.mulf %1, %9 : vector<1x128xf32>
    %c4 = arith.constant 4 : index
    %11 = memref.load %arg1[%c4] : memref<17xf32, #tpu.memory_space<smem>>
    %12 = vector.broadcast %11 : f32 to vector<1x128xf32>
    %13 = arith.mulf %3, %12 : vector<1x128xf32>
    %14 = arith.addf %10, %13 : vector<1x128xf32>
    %c8 = arith.constant 8 : index
    %15 = memref.load %arg1[%c8] : memref<17xf32, #tpu.memory_space<smem>>
    %16 = vector.broadcast %15 : f32 to vector<1x128xf32>
    %17 = arith.addf %14, %16 : vector<1x128xf32>
    %cst_5 = arith.constant 0.000000e+00 : f32
    %18 = vector.broadcast %cst_5 : f32 to vector<1x128xf32>
    %19 = arith.maximumf %17, %18 : vector<1x128xf32>
    %c12 = arith.constant 12 : index
    %20 = memref.load %arg1[%c12] : memref<17xf32, #tpu.memory_space<smem>>
    %21 = vector.broadcast %20 : f32 to vector<1x128xf32>
    %22 = arith.mulf %19, %21 : vector<1x128xf32>
    %23 = arith.addf %7, %22 : vector<1x128xf32>
    %c1_6 = arith.constant 1 : index
    %24 = memref.load %arg1[%c1_6] : memref<17xf32, #tpu.memory_space<smem>>
    %25 = vector.broadcast %24 : f32 to vector<1x128xf32>
    %26 = arith.mulf %1, %25 : vector<1x128xf32>
    %c5 = arith.constant 5 : index
    %27 = memref.load %arg1[%c5] : memref<17xf32, #tpu.memory_space<smem>>
    %28 = vector.broadcast %27 : f32 to vector<1x128xf32>
    %29 = arith.mulf %3, %28 : vector<1x128xf32>
    %30 = arith.addf %26, %29 : vector<1x128xf32>
    %c9 = arith.constant 9 : index
    %31 = memref.load %arg1[%c9] : memref<17xf32, #tpu.memory_space<smem>>
    %32 = vector.broadcast %31 : f32 to vector<1x128xf32>
    %33 = arith.addf %30, %32 : vector<1x128xf32>
    %cst_7 = arith.constant 0.000000e+00 : f32
    %34 = vector.broadcast %cst_7 : f32 to vector<1x128xf32>
    %35 = arith.maximumf %33, %34 : vector<1x128xf32>
    %c13 = arith.constant 13 : index
    %36 = memref.load %arg1[%c13] : memref<17xf32, #tpu.memory_space<smem>>
    %37 = vector.broadcast %36 : f32 to vector<1x128xf32>
    %38 = arith.mulf %35, %37 : vector<1x128xf32>
    %39 = arith.addf %23, %38 : vector<1x128xf32>
    %c2 = arith.constant 2 : index
    %40 = memref.load %arg1[%c2] : memref<17xf32, #tpu.memory_space<smem>>
    %41 = vector.broadcast %40 : f32 to vector<1x128xf32>
    %42 = arith.mulf %1, %41 : vector<1x128xf32>
    %c6 = arith.constant 6 : index
    %43 = memref.load %arg1[%c6] : memref<17xf32, #tpu.memory_space<smem>>
    %44 = vector.broadcast %43 : f32 to vector<1x128xf32>
    %45 = arith.mulf %3, %44 : vector<1x128xf32>
    %46 = arith.addf %42, %45 : vector<1x128xf32>
    %c10 = arith.constant 10 : index
    %47 = memref.load %arg1[%c10] : memref<17xf32, #tpu.memory_space<smem>>
    %48 = vector.broadcast %47 : f32 to vector<1x128xf32>
    %49 = arith.addf %46, %48 : vector<1x128xf32>
    %cst_8 = arith.constant 0.000000e+00 : f32
    %50 = vector.broadcast %cst_8 : f32 to vector<1x128xf32>
    %51 = arith.maximumf %49, %50 : vector<1x128xf32>
    %c14 = arith.constant 14 : index
    %52 = memref.load %arg1[%c14] : memref<17xf32, #tpu.memory_space<smem>>
    %53 = vector.broadcast %52 : f32 to vector<1x128xf32>
    %54 = arith.mulf %51, %53 : vector<1x128xf32>
    %55 = arith.addf %39, %54 : vector<1x128xf32>
    %c3 = arith.constant 3 : index
    %56 = memref.load %arg1[%c3] : memref<17xf32, #tpu.memory_space<smem>>
    %57 = vector.broadcast %56 : f32 to vector<1x128xf32>
    %58 = arith.mulf %1, %57 : vector<1x128xf32>
    %c7 = arith.constant 7 : index
    %59 = memref.load %arg1[%c7] : memref<17xf32, #tpu.memory_space<smem>>
    %60 = vector.broadcast %59 : f32 to vector<1x128xf32>
    %61 = arith.mulf %3, %60 : vector<1x128xf32>
    %62 = arith.addf %58, %61 : vector<1x128xf32>
    %c11 = arith.constant 11 : index
    %63 = memref.load %arg1[%c11] : memref<17xf32, #tpu.memory_space<smem>>
    %64 = vector.broadcast %63 : f32 to vector<1x128xf32>
    %65 = arith.addf %62, %64 : vector<1x128xf32>
    %cst_9 = arith.constant 0.000000e+00 : f32
    %66 = vector.broadcast %cst_9 : f32 to vector<1x128xf32>
    %67 = arith.maximumf %65, %66 : vector<1x128xf32>
    %c15 = arith.constant 15 : index
    %68 = memref.load %arg1[%c15] : memref<17xf32, #tpu.memory_space<smem>>
    %69 = vector.broadcast %68 : f32 to vector<1x128xf32>
    %70 = arith.mulf %67, %69 : vector<1x128xf32>
    %71 = arith.addf %55, %70 : vector<1x128xf32>
    %c0_10 = arith.constant 0 : index
    %c0_11 = arith.constant 0 : index
    %72 = vector.load %arg3[%c0_10, %c0_11] : memref<1x128xf32, #tpu.memory_space<vmem>>, vector<1x128xf32>
    tpu.vector_store %arg3[%c0_10, %c0_11], %71 {strides = array<i32>} : memref<1x128xf32, #tpu.memory_space<vmem>>, vector<1x128xf32>,
    return
  }
  func.func @transform_0(%arg0: i32, %arg1: memref<17xf32, #tpu.memory_space<smem>>) -> (i32, i32, i32) {
    %c0_i32 = arith.constant 0 : i32
    %c0_i32_0 = arith.constant 0 : i32
    %c0_i32_1 = arith.constant 0 : i32
    return %c0_i32, %arg0, %c0_i32_0 : i32, i32, i32
  }
  func.func @transform_1(%arg0: i32, %arg1: memref<17xf32, #tpu.memory_space<smem>>) -> (i32, i32) {
    %c0_i32 = arith.constant 0 : i32
    %c0_i32_0 = arith.constant 0 : i32
    return %arg0, %c0_i32 : i32, i32
  }
}

</mosaic_0001>

<llo_original>
// kernel: tpu_custom_call.1
$region0: #{tpu_custom_call.1}
  #allocation0 [shape = 'u32[]', space=smem, size = 0x4, offset = 0x4, fixed_abs, tag = 'smem constant byte address 0x4 - core index']
  #allocation1 [shape = 'u32[144,128]{1,0:T(1,128)}', space=vmem, size = 0x12000, scoped, tag = 'internal scratch']
  #allocation2 [shape = 's32[1]{0}', space=sflag, size = 0x4, scoped, tag = 'scoped memory for tpu_custom_call.1']
  #allocation3 [shape = 'u8[512]{0}', space=smem, size = 0x200, scoped, tag = 'prefetched SMEM operand 0']
  %s0 = inlined_call_operand.hbm [shape: f32[17], index: 0, kind: input, shape index: {}]
  %s1 = inlined_call_operand.vmem [shape: f32[2,1,128], index: 1, kind: input, shape index: {}]
  %s2 = inlined_call_operand.hbm [shape: f32[1,128], index: 2, kind: output, shape index: {}]
  %s3 = sld [smem:[#allocation0]]
  $region14: #{tpu_custom_call.1} parent=0
    _
  %s5 = ssub.s32 1, %s3
  %s6 = scalar_select 0, %s5, %s3
  %8 = dma.hbm_to_smem %s0, 16, [#allocation3], [#allocation2]
  %9 = dma.done [#allocation2], 16
  %10 = sfence
  $region1: #{tpu_custom_call.1} parent=0
    #allocation4 [shape = 'u8[512]{0}', space=vmem, size = 0x400, scoped, tag = 'output window, operand 0, single buffered']
    #allocation5 [shape = 's32[1]{0}', space=sflag, size = 0x4, scoped, tag = 'scoped memory for tpu_custom_call.1']
    %11 = vsyncpa [#allocation5], 0
    // Predicated region
    $region2: #{tpu_custom_call.1} parent=1 // pred_check
      _
    $region3: #{tpu_custom_call.1} parent=1 // pred_check_branch
      %13 = sbr.rel (0) target = $region5
    $region4: #{tpu_custom_call.1} parent=1 // pred_region
      _
    $region5: #{tpu_custom_call.1} parent=1 // pred_fallthru
      _
    %v14 = vld [vmem:[%s1] sm:$0x1]
    %s15 = scalar_lea.vmem %s1, 1
    %v16 = vld [vmem:[%s15] sm:$0x1]
    %s17 = sld [smem:[#allocation3 + $0x10]]
    %v18 = vstv %s17
    %v19 = vadd.f32 %v18, 0.0
    %s20 = sld [smem:[#allocation3]]
    %v21 = vstv %s20
    %v22 = vmul.f32 %v14, %v21
    %s23 = sld [smem:[#allocation3 + $0x4]]
    %v24 = vstv %s23
    %v25 = vmul.f32 %v16, %v24
    %v26 = vadd.f32 %v22, %v25
    %s27 = sld [smem:[#allocation3 + $0x8]]
    %v28 = vstv %s27
    %v29 = vadd.f32 %v26, %v28
    %v30 = vmax.f32 %v29, 0.0
    %s31 = sld [smem:[#allocation3 + $0xc]]
    %v32 = vstv %s31
    %v33 = vmul.f32 %v30, %v32
    %v34 = vadd.f32 %v19, %v33
    %s35 = sld [smem:[#allocation3 + $0x1]]
    %v36 = vstv %s35
    %v37 = vmul.f32 %v14, %v36
    %s38 = sld [smem:[#allocation3 + $0x5]]
    %v39 = vstv %s38
    %v40 = vmul.f32 %v16, %v39
    %v41 = vadd.f32 %v37, %v40
    %s42 = sld [smem:[#allocation3 + $0x9]]
    %v43 = vstv %s42
    %v44 = vadd.f32 %v41, %v43
    %v45 = vmax.f32 %v44, 0.0
    %s46 = sld [smem:[#allocation3 + $0xd]]
    %v47 = vstv %s46
    %v48 = vmul.f32 %v45, %v47
    %v49 = vadd.f32 %v34, %v48
    %s50 = sld [smem:[#allocation3 + $0x2]]
    %v51 = vstv %s50
    %v52 = vmul.f32 %v14, %v51
    %s53 = sld [smem:[#allocation3 + $0x6]]
    %v54 = vstv %s53
    %v55 = vmul.f32 %v16, %v54
    %v56 = vadd.f32 %v52, %v55
    %s57 = sld [smem:[#allocation3 + $0xa]]
    %v58 = vstv %s57
    %v59 = vadd.f32 %v56, %v58
    %v60 = vmax.f32 %v59, 0.0
    %s61 = sld [smem:[#allocation3 + $0xe]]
    %v62 = vstv %s61
    %v63 = vmul.f32 %v60, %v62
    %v64 = vadd.f32 %v49, %v63
    %s65 = sld [smem:[#allocation3 + $0x3]]
    %v66 = vstv %s65
    %v67 = vmul.f32 %v14, %v66
    %s68 = sld [smem:[#allocation3 + $0x7]]
    %v69 = vstv %s68
    %v70 = vmul.f32 %v16, %v69
    %v71 = vadd.f32 %v67, %v70
    %s72 = sld [smem:[#allocation3 + $0xb]]
    %v73 = vstv %s72
    %v74 = vadd.f32 %v71, %v73
    %v75 = vmax.f32 %v74, 0.0
    %s76 = sld [smem:[#allocation3 + $0xf]]
    %v77 = vstv %s76
    %v78 = vmul.f32 %v75, %v77
    %v79 = vadd.f32 %v64, %v78
    %80 = vst [vmem:[#allocation4] sm:$0x1] %v79
    // Predicated region
    $region6: #{tpu_custom_call.1} parent=1 // pred_check
      _
    $region7: #{tpu_custom_call.1} parent=1 // pred_check_branch
      %82 = sbr.rel (0) target = $region9
    $region8: #{tpu_custom_call.1} parent=1 // pred_region
      %s84 = ssub.s32 16, 16
      %85 = vsyncadd [#allocation5], %s84
      %s87 = sshll.u32 [#allocation4], 4
      %s88 = int_to_ptr.vmem [resolvable:$true] %s87
      %90 = dma.vmem_to_hbm [thread:$0]  %s88, 16, %s2, [#allocation5]
    $region9: #{tpu_custom_call.1} parent=1 // pred_fallthru
      _
    // Predicated region
    $region10: #{tpu_custom_call.1} parent=1 // pred_check
      _
    $region11: #{tpu_custom_call.1} parent=1 // pred_check_branch
      %92 = sbr.rel (0) target = $region13
    $region12: #{tpu_custom_call.1} parent=1 // pred_region
      %93 = dma.done [#allocation5], 16
    $region13: #{tpu_custom_call.1} parent=1 // pred_fallthru
      _
    %94 = vsyncpa [#allocation5], 1

</llo_original>
